<compile_context>
chip_gen: v7x
topology: tpu7x:2x2x1
jax: 0.10.0
libtpu: 0.0.40
codegen_flags: <defaults>
</compile_context>

<pallas_src>
import functools

import jax
import jax.numpy as jnp
from jax.experimental import pallas as pl
from jax.experimental.pallas import tpu as pltpu


# --------------------------------------------------------------------------
# Fused Pallas kernel
# --------------------------------------------------------------------------
def _caconv_fused_kernel(b_ref, c_ref, w1_ref, b1_ref, w2_ref, b2_ref,
                         wrow_ref, bias_ref, patches_ref, o_ref, weff_ref):
    """Fused: adj = relu(c@W1+b1)@W2+b2 ; out = (W + b*adj) @ patches + bias."""
    b = b_ref[0, 0]                                   # SMEM scalar

    # ---- conditioning MLP (tiny, f32) -------------------------------------
    h = jnp.dot(c_ref[...], w1_ref[...], preferred_element_type=jnp.float32)
    h = jnp.maximum(h + b1_ref[...], 0.0)
    adj_flat = (jnp.dot(h, w2_ref[...], preferred_element_type=jnp.float32)
                + b2_ref[...])                        # (1, Cout*K)

    # ---- effective conv weight, still flat ---------------------------------
    w_eff_flat = wrow_ref[...] + b * adj_flat         # (1, Cout*K)

    # Unflatten (1, Cout*K) -> (Cout, K) via static row stores into a small
    # VMEM scratch (avoids a lane-layout-changing in-kernel reshape).
    cout, k = weff_ref.shape
    for co in range(cout):                            # static unroll (Cout small)
        weff_ref[pl.ds(co, 1), :] = w_eff_flat[:, co * k:(co + 1) * k]

    # ---- conv as GEMM: (Cout, K) @ (K, P) -> (Cout, P) ----------------------
    # bf16 operands, f32 accumulation (MXU-native); output last dim = Hout*Wout
    # (multiple of 128 here) -> unmasked lane-dense stores.
    w_eff = weff_ref[...].astype(jnp.bfloat16)
    out = jnp.dot(w_eff, patches_ref[...], preferred_element_type=jnp.float32)
    o_ref[...] = out + bias_ref[...]                  # bias (Cout, 1) broadcast


def _fused_call(b_arr, cond_row, w1, b1_row, w2, b2_row, w_row, bias_col,
                patches):
    cout = bias_col.shape[0]
    k, p = patches.shape
    vmem = pltpu.MemorySpace.VMEM
    return pl.pallas_call(
        _caconv_fused_kernel,
        out_shape=jax.ShapeDtypeStruct((cout, p), jnp.float32),
        in_specs=[pl.BlockSpec(memory_space=pltpu.MemorySpace.SMEM)]   # b
                 + [pl.BlockSpec(memory_space=vmem)] * 8,
        out_specs=pl.BlockSpec(memory_space=vmem),
        scratch_shapes=[pltpu.VMEM((cout, k), jnp.float32)],
    )(b_arr, cond_row, w1, b1_row, w2, b2_row, w_row, bias_col, patches)


# --------------------------------------------------------------------------
# Host-side glue (im2col in K-major layout, jitted forward)
# --------------------------------------------------------------------------
def _im2col_kmajor(x_chw, kernel_size, stride, padding):
    """Patches (Cin*KH*KW, Hout*Wout); k ordered (cin, kh, kw) to match OIHW."""
    cin, h, w = x_chw.shape
    kh_, kw_ = kernel_size
    sh, sw = stride
    ph, pw = padding
    hout = (h + 2 * ph - kh_) // sh + 1
    wout = (w + 2 * pw - kw_) // sw + 1
    xp = jnp.pad(x_chw, ((0, 0), (ph, ph), (pw, pw)))
    cols = []
    for kh in range(kh_):
        for kw in range(kw_):
            cols.append(xp[:, kh:kh + sh * hout:sh, kw:kw + sw * wout:sw])
    patches = jnp.stack(cols, axis=1)                 # (Cin, KH*KW, Hout, Wout)
    patches = patches.reshape(cin * kh_ * kw_, hout * wout)
    return patches, hout, wout


@functools.partial(jax.jit, static_argnames=("kernel_size", "stride", "padding",
                                             "out_channels"))
def caconv_forward(x, cond, conv_w_row, conv_b_col, w1, b1_row, w2, b2_row,
                   b_arr, *, kernel_size, stride, padding, out_channels):
    # The PyTorch loop keeps only the LAST iteration: use x[-1] / adj row B-1
    # (computing the MLP only for that row; identical result, no wasted work).
    cond_row = cond[-1:].astype(jnp.float32)
    x_last = x[-1].astype(jnp.bfloat16)               # bf16 GEMM operand
    patches, hout, wout = _im2col_kmajor(x_last, kernel_size, stride, padding)
    out = _fused_call(b_arr, cond_row, w1, b1_row, w2, b2_row,
                      conv_w_row, conv_b_col, patches)       # (Cout, Hout*Wout)
    return out.reshape(out_channels, hout, wout)


class CAConvPallas:
    def __init__(self, key, in_channels, out_channels, kernel_size, stride=1,
                 padding=0, groups=1, bias=True, b=1, mlp_hidden=16, c_len=8,
                 condition=False):
        assert groups == 1  # TODO(synk): grouped conv not supported
        to2 = lambda v: v if isinstance(v, tuple) else (v, v)
        self.in_channels = in_channels
        self.out_channels = out_channels
        self.kernel_size = to2(kernel_size)
        self.stride = to2(stride)
        self.padding = to2(padding)
        self.b = float(b)
        self.condition = condition

        kh, kw = self.kernel_size
        adj_dim = kh * kw * in_channels * out_channels
        keys = jax.random.split(key, 7)
        s = 0.1
        self.conv_w = s * jax.random.normal(
            keys[0], (out_channels, in_channels, kh, kw), jnp.float32)
        self.conv_b = (s * jax.random.normal(keys[1], (out_channels,), jnp.float32)
                       if bias else jnp.zeros((out_channels,), jnp.float32))
        self.w1 = s * jax.random.normal(keys[2], (c_len, mlp_hidden), jnp.float32)
        self.b1 = s * jax.random.normal(keys[3], (mlp_hidden,), jnp.float32)
        self.w2 = s * jax.random.normal(keys[4], (mlp_hidden, adj_dim), jnp.float32)
        self.b2 = s * jax.random.normal(keys[5], (adj_dim,), jnp.float32)
        if not condition:
            self.c = jax.random.normal(keys[6], (1, c_len), jnp.float32)

        # Kernel-layout parameters (precomputed once).
        self.conv_w_row = self.conv_w.reshape(1, -1)          # (1, Cout*Cin*KH*KW)
        self.conv_b_col = self.conv_b.reshape(-1, 1)          # (Cout, 1)
        self.b1_row = self.b1.reshape(1, -1)
        self.b2_row = self.b2.reshape(1, -1)
        self.b_arr = jnp.full((1, 1), self.b, jnp.float32)    # SMEM scalar input

    def __call__(self, x, c=None):
        cond = c if self.condition else self.c
        return caconv_forward(
            x, cond, self.conv_w_row, self.conv_b_col,
            self.w1, self.b1_row, self.w2, self.b2_row, self.b_arr,
            kernel_size=self.kernel_size, stride=self.stride,
            padding=self.padding, out_channels=self.out_channels)


# --------------------------------------------------------------------------
# Pure-JAX reference (f32) mirroring the PyTorch module
# --------------------------------------------------------------------------
def reference_forward(m, x, c=None):
    cond = c if m.condition else m.c
    h = jnp.maximum(cond @ m.w1 + m.b1, 0.0)
    adj = (h @ m.w2 + m.b2).reshape(x.shape[0], m.out_channels, m.in_channels,
                                    *m.kernel_size)
    w_eff = m.conv_w + m.b * adj[x.shape[0] - 1]
    out = jax.lax.conv_general_dilated(
        x[x.shape[0] - 1:x.shape[0]], w_eff, window_strides=m.stride,
        padding=[(m.padding[0], m.padding[0]), (m.padding[1], m.padding[1])],
        dimension_numbers=("NCHW", "OIHW", "NCHW"))[0]
    return out + m.conv_b[:, None, None]


# --------------------------------------------------------------------------
if __name__ == "__main__":
    key = jax.random.PRNGKey(0)
    k_m1, k_x1, k_m2, k_x2, k_c2 = jax.random.split(key, 5)

    # Tolerance is loosened vs. the f32 reference because the conv GEMM runs
    # with bf16 operands (f32 accumulation) on the MXU.
    TOL = 2e-2

    # Case 1: condition=False (module default). The .view in the reference
    # forces batch == 1 in this mode.
    m1 = CAConvPallas(k_m1, in_channels=4, out_channels=8, kernel_size=3,
                      stride=1, padding=1, b=1, mlp_hidden=16, c_len=8,
                      condition=False)
    x1 = jax.random.normal(k_x1, (1, 4, 16, 16), jnp.float32)
    y1 = m1(x1)
    jax.block_until_ready(y1)
    r1 = reference_forward(m1, x1)
    assert y1.shape == (8, 16, 16)
    assert jnp.allclose(y1, r1, atol=TOL, rtol=TOL)

    # Case 2: condition=True with batch=2 and an external conditioning vector.
    m2 = CAConvPallas(k_m2, in_channels=4, out_channels=8, kernel_size=3,
                      stride=1, padding=1, b=1, mlp_hidden=16, c_len=8,
                      condition=True)
    x2 = jax.random.normal(k_x2, (2, 4, 16, 16), jnp.float32)
    c2 = jax.random.normal(k_c2, (2, 8), jnp.float32)
    y2 = m2(x2, c2)
    jax.block_until_ready(y2)
    r2 = reference_forward(m2, x2, c2)
    assert y2.shape == (8, 16, 16)
    assert jnp.allclose(y2, r2, atol=TOL, rtol=TOL)

    print("KERNEL_OK")
</pallas_src>

<mosaic_0001>
module attributes {stable_mosaic.version = 11 : i64} {
  func.func @_caconv_fused_kernel(%arg0: memref<1x1xf32, #tpu.memory_space<smem>>, %arg1: memref<1x8xf32, #tpu.memory_space<vmem>>, %arg2: memref<8x16xf32, #tpu.memory_space<vmem>>, %arg3: memref<1x16xf32, #tpu.memory_space<vmem>>, %arg4: memref<16x288xf32, #tpu.memory_space<vmem>>, %arg5: memref<1x288xf32, #tpu.memory_space<vmem>>, %arg6: memref<1x288xf32, #tpu.memory_space<vmem>>, %arg7: memref<8x1xf32, #tpu.memory_space<vmem>>, %arg8: memref<36x256xbf16, #tpu.memory_space<vmem>>, %arg9: memref<8x256xf32, #tpu.memory_space<vmem>>, %arg10: memref<8x36xf32, #tpu.memory_space<vmem>>) attributes {dimension_semantics = [], scalar_prefetch = 0 : i64, scratch_operands = 1 : i64, tpu.core_type = #tpu.core_type<tc>} {
    %c0 = arith.constant 0 : index
    %c0_0 = arith.constant 0 : index
    %0 = memref.load %arg0[%c0, %c0_0] : memref<1x1xf32, #tpu.memory_space<smem>>
    %c0_1 = arith.constant 0 : index
    %c0_2 = arith.constant 0 : index
    %1 = vector.load %arg1[%c0_1, %c0_2] : memref<1x8xf32, #tpu.memory_space<vmem>>, vector<1x8xf32>
    %c0_3 = arith.constant 0 : index
    %c0_4 = arith.constant 0 : index
    %2 = vector.load %arg2[%c0_3, %c0_4] : memref<8x16xf32, #tpu.memory_space<vmem>>, vector<8x16xf32>
    %cst = arith.constant dense<0.000000e+00> : vector<1x16xf32>
    %3 = tpu.matmul %1, %2, %cst {dimension_numbers = #tpu.dot_dimension_numbers<[1], [0], [0], [1], [0, 0, 1, 1], [], []>} : vector<1x8xf32>, vector<8x16xf32>, vector<1x16xf32> -> vector<1x16xf32>
    %c0_5 = arith.constant 0 : index
    %c0_6 = arith.constant 0 : index
    %4 = vector.load %arg3[%c0_5, %c0_6] : memref<1x16xf32, #tpu.memory_space<vmem>>, vector<1x16xf32>
    %5 = arith.addf %3, %4 : vector<1x16xf32>
    %cst_7 = arith.constant 0.000000e+00 : f32
    %6 = vector.broadcast %cst_7 : f32 to vector<1x16xf32>
    %7 = arith.maximumf %5, %6 : vector<1x16xf32>
    %c0_8 = arith.constant 0 : index
    %c0_9 = arith.constant 0 : index
    %8 = vector.load %arg4[%c0_8, %c0_9] : memref<16x288xf32, #tpu.memory_space<vmem>>, vector<16x288xf32>
    %cst_10 = arith.constant dense<0.000000e+00> : vector<1x288xf32>
    %9 = tpu.matmul %7, %8, %cst_10 {dimension_numbers = #tpu.dot_dimension_numbers<[1], [0], [0], [1], [0, 0, 1, 1], [], []>} : vector<1x16xf32>, vector<16x288xf32>, vector<1x288xf32> -> vector<1x288xf32>
    %c0_11 = arith.constant 0 : index
    %c0_12 = arith.constant 0 : index
    %10 = vector.load %arg5[%c0_11, %c0_12] : memref<1x288xf32, #tpu.memory_space<vmem>>, vector<1x288xf32>
    %11 = arith.addf %9, %10 : vector<1x288xf32>
    %c0_13 = arith.constant 0 : index
    %c0_14 = arith.constant 0 : index
    %12 = vector.load %arg6[%c0_13, %c0_14] : memref<1x288xf32, #tpu.memory_space<vmem>>, vector<1x288xf32>
    %13 = vector.broadcast %0 : f32 to vector<1x288xf32>
    %14 = arith.mulf %13, %11 : vector<1x288xf32>
    %15 = arith.addf %12, %14 : vector<1x288xf32>
    %16 = vector.extract_strided_slice %15 {offsets = [0, 0], sizes = [1, 36], strides = [1, 1]} : vector<1x288xf32> to vector<1x36xf32>
    %c0_15 = arith.constant 0 : index
    %c0_16 = arith.constant 0 : index
    %17 = vector.load %arg10[%c0_15, %c0_16] : memref<8x36xf32, #tpu.memory_space<vmem>>, vector<1x36xf32>
    tpu.vector_store %arg10[%c0_15, %c0_16], %16 {strides = array<i32>} : memref<8x36xf32, #tpu.memory_space<vmem>>, vector<1x36xf32>,
    %18 = vector.extract_strided_slice %15 {offsets = [0, 36], sizes = [1, 36], strides = [1, 1]} : vector<1x288xf32> to vector<1x36xf32>
    %c1 = arith.constant 1 : index
    %c0_17 = arith.constant 0 : index
    %19 = vector.load %arg10[%c1, %c0_17] : memref<8x36xf32, #tpu.memory_space<vmem>>, vector<1x36xf32>
    tpu.vector_store %arg10[%c1, %c0_17], %18 {strides = array<i32>} : memref<8x36xf32, #tpu.memory_space<vmem>>, vector<1x36xf32>,
    %20 = vector.extract_strided_slice %15 {offsets = [0, 72], sizes = [1, 36], strides = [1, 1]} : vector<1x288xf32> to vector<1x36xf32>
    %c2 = arith.constant 2 : index
    %c0_18 = arith.constant 0 : index
    %21 = vector.load %arg10[%c2, %c0_18] : memref<8x36xf32, #tpu.memory_space<vmem>>, vector<1x36xf32>
    tpu.vector_store %arg10[%c2, %c0_18], %20 {strides = array<i32>} : memref<8x36xf32, #tpu.memory_space<vmem>>, vector<1x36xf32>,
    %22 = vector.extract_strided_slice %15 {offsets = [0, 108], sizes = [1, 36], strides = [1, 1]} : vector<1x288xf32> to vector<1x36xf32>
    %c3 = arith.constant 3 : index
    %c0_19 = arith.constant 0 : index
    %23 = vector.load %arg10[%c3, %c0_19] : memref<8x36xf32, #tpu.memory_space<vmem>>, vector<1x36xf32>
    tpu.vector_store %arg10[%c3, %c0_19], %22 {strides = array<i32>} : memref<8x36xf32, #tpu.memory_space<vmem>>, vector<1x36xf32>,
    %24 = vector.extract_strided_slice %15 {offsets = [0, 144], sizes = [1, 36], strides = [1, 1]} : vector<1x288xf32> to vector<1x36xf32>
    %c4 = arith.constant 4 : index
    %c0_20 = arith.constant 0 : index
    %25 = vector.load %arg10[%c4, %c0_20] : memref<8x36xf32, #tpu.memory_space<vmem>>, vector<1x36xf32>
    tpu.vector_store %arg10[%c4, %c0_20], %24 {strides = array<i32>} : memref<8x36xf32, #tpu.memory_space<vmem>>, vector<1x36xf32>,
    %26 = vector.extract_strided_slice %15 {offsets = [0, 180], sizes = [1, 36], strides = [1, 1]} : vector<1x288xf32> to vector<1x36xf32>
    %c5 = arith.constant 5 : index
    %c0_21 = arith.constant 0 : index
    %27 = vector.load %arg10[%c5, %c0_21] : memref<8x36xf32, #tpu.memory_space<vmem>>, vector<1x36xf32>
    tpu.vector_store %arg10[%c5, %c0_21], %26 {strides = array<i32>} : memref<8x36xf32, #tpu.memory_space<vmem>>, vector<1x36xf32>,
    %28 = vector.extract_strided_slice %15 {offsets = [0, 216], sizes = [1, 36], strides = [1, 1]} : vector<1x288xf32> to vector<1x36xf32>
    %c6 = arith.constant 6 : index
    %c0_22 = arith.constant 0 : index
    %29 = vector.load %arg10[%c6, %c0_22] : memref<8x36xf32, #tpu.memory_space<vmem>>, vector<1x36xf32>
    tpu.vector_store %arg10[%c6, %c0_22], %28 {strides = array<i32>} : memref<8x36xf32, #tpu.memory_space<vmem>>, vector<1x36xf32>,
    %30 = vector.extract_strided_slice %15 {offsets = [0, 252], sizes = [1, 36], strides = [1, 1]} : vector<1x288xf32> to vector<1x36xf32>
    %c7 = arith.constant 7 : index
    %c0_23 = arith.constant 0 : index
    %31 = vector.load %arg10[%c7, %c0_23] : memref<8x36xf32, #tpu.memory_space<vmem>>, vector<1x36xf32>
    tpu.vector_store %arg10[%c7, %c0_23], %30 {strides = array<i32>} : memref<8x36xf32, #tpu.memory_space<vmem>>, vector<1x36xf32>,
    %c0_24 = arith.constant 0 : index
    %c0_25 = arith.constant 0 : index
    %32 = vector.load %arg10[%c0_24, %c0_25] : memref<8x36xf32, #tpu.memory_space<vmem>>, vector<8x36xf32>
    %33 = arith.truncf %32 : vector<8x36xf32> to vector<8x36xbf16>
    %c0_26 = arith.constant 0 : index
    %c0_27 = arith.constant 0 : index
    %34 = vector.load %arg8[%c0_26, %c0_27] : memref<36x256xbf16, #tpu.memory_space<vmem>>, vector<36x256xbf16>
    %cst_28 = arith.constant dense<0.000000e+00> : vector<8x256xf32>
    %35 = tpu.matmul %33, %34, %cst_28 {dimension_numbers = #tpu.dot_dimension_numbers<[1], [0], [0], [1], [0, 0, 1, 1], [], []>} : vector<8x36xbf16>, vector<36x256xbf16>, vector<8x256xf32> -> vector<8x256xf32>
    %c0_29 = arith.constant 0 : index
    %c0_30 = arith.constant 0 : index
    %36 = vector.load %arg7[%c0_29, %c0_30] : memref<8x1xf32, #tpu.memory_space<vmem>>, vector<8x1xf32>
    %37 = vector.broadcast %36 : vector<8x1xf32> to vector<8x256xf32>
    %38 = arith.addf %35, %37 : vector<8x256xf32>
    %c0_31 = arith.constant 0 : index
    %c0_32 = arith.constant 0 : index
    %39 = vector.load %arg9[%c0_31, %c0_32] : memref<8x256xf32, #tpu.memory_space<vmem>>, vector<8x256xf32>
    tpu.vector_store %arg9[%c0_31, %c0_32], %38 {strides = array<i32>} : memref<8x256xf32, #tpu.memory_space<vmem>>, vector<8x256xf32>,
    return
  }
}

</mosaic_0001>

<llo_original>
// kernel: caconv_forward.1
$region0: #{caconv_forward.1}
  #allocation0 [shape = 'u32[]', space=smem, size = 0x4, offset = 0x4, fixed_abs, tag = 'smem constant byte address 0x4 - core index']
  #allocation1 [shape = 'u32[144,128]{1,0:T(1,128)}', space=vmem, size = 0x12000, scoped, tag = 'internal scratch']
  #allocation2 [shape = 'f32[8,36]{1,0:T(8,128)}', space=vmem, size = 0x1000, scoped, tag = 'scratch operand']
  #allocation3 [shape = 'f32[1,1]{1,0:T(1,128)S(6)}', space=smem, size = 0x200, scoped, tag = 'scoped memory for caconv_forward.1']
  %s0 = inlined_call_operand.<no memory space> [shape: f32[1,1], index: 0, kind: input, shape index: {}]
  %s1 = inlined_call_operand.vmem [shape: f32[1,8], index: 1, kind: input, shape index: {}]
  %s2 = inlined_call_operand.vmem [shape: f32[8,16], index: 2, kind: input, shape index: {}]
  %s3 = inlined_call_operand.vmem [shape: f32[1,16], index: 3, kind: input, shape index: {}]
  %s4 = inlined_call_operand.vmem [shape: f32[16,288], index: 4, kind: input, shape index: {}]
  %s5 = inlined_call_operand.vmem [shape: f32[1,288], index: 5, kind: input, shape index: {}]
  %s6 = inlined_call_operand.vmem [shape: f32[1,288], index: 6, kind: input, shape index: {}]
  %s7 = inlined_call_operand.vmem [shape: f32[8,1], index: 7, kind: input, shape index: {}]
  %s8 = inlined_call_operand.vmem [shape: bf16[36,256], index: 8, kind: input, shape index: {}]
  %s9 = inlined_call_operand.vmem [shape: f32[8,256], index: 9, kind: output, shape index: {}]
  %s10 = sld [smem:[#allocation0]]
  $region46: #{caconv_forward.1} parent=0
    _
  %s12 = ssub.s32 1, %s10
  %s13 = scalar_select 0, %s12, %s10
  %14 = sst [smem:[#allocation3]] %s0
  // Predicated region
  $region2: #{caconv_forward.1} parent=0 // pred_check
    _
  $region3: #{caconv_forward.1} parent=0 // pred_check_branch
    %16 = sbr.rel (0) target = $region5
  $region4: #{caconv_forward.1} parent=0 // pred_region
    _
  $region5: #{caconv_forward.1} parent=0 // pred_fallthru
    _
  // Predicated region
  $region6: #{caconv_forward.1} parent=0 // pred_check
    _
  $region7: #{caconv_forward.1} parent=0 // pred_check_branch
    %18 = sbr.rel (0) target = $region9
  $region8: #{caconv_forward.1} parent=0 // pred_region
    _
  $region9: #{caconv_forward.1} parent=0 // pred_fallthru
    _
  // Predicated region
  $region10: #{caconv_forward.1} parent=0 // pred_check
    _
  $region11: #{caconv_forward.1} parent=0 // pred_check_branch
    %20 = sbr.rel (0) target = $region13
  $region12: #{caconv_forward.1} parent=0 // pred_region
    _
  $region13: #{caconv_forward.1} parent=0 // pred_fallthru
    _
  // Predicated region
  $region14: #{caconv_forward.1} parent=0 // pred_check
    _
  $region15: #{caconv_forward.1} parent=0 // pred_check_branch
    %22 = sbr.rel (0) target = $region17
  $region16: #{caconv_forward.1} parent=0 // pred_region
    _
  $region17: #{caconv_forward.1} parent=0 // pred_fallthru
    _
  // Predicated region
  $region18: #{caconv_forward.1} parent=0 // pred_check
    _
  $region19: #{caconv_forward.1} parent=0 // pred_check_branch
    %24 = sbr.rel (0) target = $region21
  $region20: #{caconv_forward.1} parent=0 // pred_region
    _
  $region21: #{caconv_forward.1} parent=0 // pred_fallthru
    _
  // Predicated region
  $region22: #{caconv_forward.1} parent=0 // pred_check
    _
  $region23: #{caconv_forward.1} parent=0 // pred_check_branch
    %26 = sbr.rel (0) target = $region25
  $region24: #{caconv_forward.1} parent=0 // pred_region
    _
  $region25: #{caconv_forward.1} parent=0 // pred_fallthru
    _
  // Predicated region
  $region26: #{caconv_forward.1} parent=0 // pred_check
    _
  $region27: #{caconv_forward.1} parent=0 // pred_check_branch
    %28 = sbr.rel (0) target = $region29
  $region28: #{caconv_forward.1} parent=0 // pred_region
    _
  $region29: #{caconv_forward.1} parent=0 // pred_fallthru
    _
  // Predicated region
  $region30: #{caconv_forward.1} parent=0 // pred_check
    _
  $region31: #{caconv_forward.1} parent=0 // pred_check_branch
    %30 = sbr.rel (0) target = $region33
  $region32: #{caconv_forward.1} parent=0 // pred_region
    _
  $region33: #{caconv_forward.1} parent=0 // pred_fallthru
    _
  // Predicated region
  $region34: #{caconv_forward.1} parent=0 // pred_check
    _
  $region35: #{caconv_forward.1} parent=0 // pred_check_branch
    %32 = sbr.rel (0) target = $region37
  $region36: #{caconv_forward.1} parent=0 // pred_region
    _
  $region37: #{caconv_forward.1} parent=0 // pred_fallthru
    _
  %s34 = sld [smem:[#allocation3]]
  %v35 = vld [vmem:[%s1] sm:$0x1]
  %v36 = vld [vmem:[%s2] sm:$0xff]
  %v37 = vld [vmem:[%s3] sm:$0x1]
  %vm38 = vcmask 64512
  %v40 = vsel %vm38, %v35, 0
  %42 = vmatprep.subr.mxu0 0.0
  %43 = vmatpush1.msra.mxu0 %v36
  %44 = vmatprep.subr.mxu0 0.0
  %45 = vmatpush1.msra.mxu0 0.0
  %46 = vmatprep.subr.mxu0 0.0
  %47 = vmatpush1.msra.mxu0 0.0
  %48 = vmatprep.subr.mxu0 0.0
  %49 = vmatpush1.msra.mxu0 0.0
  %50 = vmatprep.subr.mxu0 0.0
  %51 = vmatpush1.msra.mxu0 0.0
  %52 = vmatprep.subr.mxu0 0.0
  %53 = vmatpush1.msra.mxu0 0.0
  %54 = vmatprep.subr.mxu0 0.0
  %55 = vmatpush1.msra.mxu0 0.0
  %56 = vmatprep.subr.mxu0 0.0
  %57 = vmatpush1.msra.mxu0 0.0
  %58 = vmatprep.subr.mxu0 0.0
  %59 = vmatpush1.msra.mxu0 0.0
  %60 = vmatprep.subr.mxu0 0.0
  %61 = vmatpush1.msra.mxu0 0.0
  %62 = vmatprep.subr.mxu0 0.0
  %63 = vmatpush1.msra.mxu0 0.0
  %64 = vmatprep.subr.mxu0 0.0
  %65 = vmatpush1.msra.mxu0 0.0
  %66 = vmatprep.subr.mxu0 0.0
  %67 = vmatpush1.msra.mxu0 0.0
  %68 = vmatprep.subr.mxu0 0.0
  %69 = vmatpush1.msra.mxu0 0.0
  %70 = vmatprep.subr.mxu0 0.0
  %71 = vmatpush1.msra.mxu0 0.0
  %72 = vmatprep.subr.mxu0 0.0
  %73 = vmatpush1.msra.mxu0 0.0
  %74 = vmatprep.subr.mxu0 0.0
  %75 = vmatpush1.msra.mxu0 0.0
  %76 = vmatprep.subr.mxu0 0.0
  %77 = vmatpush1.msra.mxu0 0.0
  %78 = vmatprep.subr.mxu0 0.0
  %79 = vmatpush1.msra.mxu0 0.0
  %80 = vmatprep.subr.mxu0 0.0
  %81 = vmatpush1.msra.mxu0 0.0
  %82 = vmatprep.subr.mxu0 0.0
  %83 = vmatpush1.msra.mxu0 0.0
  %84 = vmatprep.subr.mxu0 0.0
  %85 = vmatpush1.msra.mxu0 0.0
  %86 = vmatprep.subr.mxu0 0.0
  %87 = vmatpush1.msra.mxu0 0.0
  %88 = vmatprep.subr.mxu0 0.0
  %89 = vmatpush1.msra.mxu0 0.0
  %90 = vmatprep.subr.mxu0 0.0
  %91 = vmatpush1.msra.mxu0 0.0
  %92 = vmatprep.subr.mxu0 0.0
  %93 = vmatpush1.msra.mxu0 0.0
  %94 = vmatprep.subr.mxu0 0.0
  %95 = vmatpush1.msra.mxu0 0.0
  %96 = vmatprep.subr.mxu0 0.0
  %97 = vmatpush1.msra.mxu0 0.0
  %98 = vmatprep.subr.mxu0 0.0
  %99 = vmatpush1.msra.mxu0 0.0
  %100 = vmatprep.subr.mxu0 0.0
  %101 = vmatpush1.msra.mxu0 0.0
  %102 = vmatprep.subr.mxu0 0.0
  %103 = vmatpush1.msra.mxu0 0.0
  %104 = vmatprep.subr.mxu0 0.0
  %105 = vmatpush1.msra.mxu0 0.0
  %106 = vmatprep.mubr.f32.mxu0 0.0
  %107 = vmatmul.mubr.f32.gmra.mrb[0].mxu0 %v40
  %v108 = vpop.f32.mrb[0].mxu0
  %v109 = vadd.f32 %v37, %v108
  %v110 = vpop.f32.mrb[0].mxu0
  %111 = vdwg.mxu0
  %v112 = vmax.f32 %v109, 0.0
  %v113 = vld [vmem:[%s4] sm:$0xff]
  %v114 = vld [vmem:[%s4 + $0x8] sm:$0xff]
  %v115 = vld [vmem:[%s4 + $0x10] sm:$0xff]
  %v116 = vld [vmem:[%s4 + $0x18] sm:$0xff]
  %v117 = vld [vmem:[%s4 + $0x20] sm:$0xff]
  %v118 = vld [vmem:[%s4 + $0x28] sm:$0xff]
  %v119 = vld [vmem:[%s5] sm:$0x7]
  %v121 = vlaneseq
  %v122 = vshrl.u32 %v121, 7
  %v123 = vsub.s32 0, %v122
  %v124 = vrot.slane %v119, %v123
  %v125 = vlaneseq
  %v126 = vshrl.u32 %v125, 7
  %v127 = vsub.s32 1, %v126
  %v128 = vrot.slane %v119, %v127
  %v129 = vlaneseq
  %v130 = vshrl.u32 %v129, 7
  %v131 = vsub.s32 2, %v130
  %v132 = vrot.slane %v119, %v131
  %vm136 = vcmask 130048
  %v138 = vsel %vm136, %v112, 0
  %140 = vmatprep.subr.mxu0 %v114
  %141 = vmatpush1.msra.mxu0 %v113
  %142 = vmatprep.subr.mxu0 %v117
  %143 = vmatpush1.msra.mxu0 %v116
  %144 = vmatprep.subr.mxu0 0.0
  %145 = vmatpush1.msra.mxu0 0.0
  %146 = vmatprep.subr.mxu0 0.0
  %147 = vmatpush1.msra.mxu0 0.0
  %148 = vmatprep.subr.mxu0 0.0
  %149 = vmatpush1.msra.mxu0 0.0
  %150 = vmatprep.subr.mxu0 0.0
  %151 = vmatpush1.msra.mxu0 0.0
  %152 = vmatprep.subr.mxu0 0.0
  %153 = vmatpush1.msra.mxu0 0.0
  %154 = vmatprep.subr.mxu0 0.0
  %155 = vmatpush1.msra.mxu0 0.0
  %156 = vmatprep.subr.mxu0 0.0
  %157 = vmatpush1.msra.mxu0 0.0
  %158 = vmatprep.subr.mxu0 0.0
  %159 = vmatpush1.msra.mxu0 0.0
  %160 = vmatprep.subr.mxu0 0.0
  %161 = vmatpush1.msra.mxu0 0.0
  %162 = vmatprep.subr.mxu0 0.0
  %163 = vmatpush1.msra.mxu0 0.0
  %164 = vmatprep.subr.mxu0 0.0
  %165 = vmatpush1.msra.mxu0 0.0
  %166 = vmatprep.subr.mxu0 0.0
  %167 = vmatpush1.msra.mxu0 0.0
  %168 = vmatprep.subr.mxu0 0.0
  %169 = vmatpush1.msra.mxu0 0.0
  %170 = vmatprep.subr.mxu0 0.0
  %171 = vmatpush1.msra.mxu0 0.0
  %172 = vmatprep.subr.mxu0 0.0
  %173 = vmatpush1.msra.mxu0 0.0
  %174 = vmatprep.subr.mxu0 0.0
  %175 = vmatpush1.msra.mxu0 0.0
  %176 = vmatprep.subr.mxu0 0.0
  %177 = vmatpush1.msra.mxu0 0.0
  %178 = vmatprep.subr.mxu0 0.0
  %179 = vmatpush1.msra.mxu0 0.0
  %180 = vmatprep.subr.mxu0 0.0
  %181 = vmatpush1.msra.mxu0 0.0
  %182 = vmatprep.subr.mxu0 0.0
  %183 = vmatpush1.msra.mxu0 0.0
  %184 = vmatprep.subr.mxu0 0.0
  %185 = vmatpush1.msra.mxu0 0.0
  %186 = vmatprep.subr.mxu0 0.0
  %187 = vmatpush1.msra.mxu0 0.0
  %188 = vmatprep.subr.mxu0 0.0
  %189 = vmatpush1.msra.mxu0 0.0
  %190 = vmatprep.subr.mxu0 0.0
  %191 = vmatpush1.msra.mxu0 0.0
  %192 = vmatprep.subr.mxu0 0.0
  %193 = vmatpush1.msra.mxu0 0.0
  %194 = vmatprep.subr.mxu0 0.0
  %195 = vmatpush1.msra.mxu0 0.0
  %196 = vmatprep.subr.mxu0 0.0
  %197 = vmatpush1.msra.mxu0 0.0
  %198 = vmatprep.subr.mxu0 0.0
  %199 = vmatpush1.msra.mxu0 0.0
  %200 = vmatprep.subr.mxu0 0.0
  %201 = vmatpush1.msra.mxu0 0.0
  %202 = vmatprep.subr.mxu0 0.0
  %203 = vmatpush1.msra.mxu0 0.0
  %204 = vmatprep.mubr.f32.mxu0 0.0
  %205 = vmatmul.mubr.f32.gmra.mrb[0].mxu0 %v138
  %v206 = vpop.f32.mrb[0].mxu0
  %v207 = vadd.f32 %v124, %v206
  %v208 = vpop.f32.mrb[0].mxu0
  %v209 = vadd.f32 %v128, %v208
  %210 = vdwg.mxu0
  %211 = vmatprep.subr.mxu0 0.0
  %212 = vmatpush1.msra.mxu0 %v115
  %213 = vmatprep.subr.mxu0 0.0
  %214 = vmatpush1.msra.mxu0 %v118
  %215 = vmatprep.subr.mxu0 0.0
  %216 = vmatpush1.msra.mxu0 0.0
  %217 = vmatprep.subr.mxu0 0.0
  %218 = vmatpush1.msra.mxu0 0.0
  %219 = vmatprep.subr.mxu0 0.0
  %220 = vmatpush1.msra.mxu0 0.0
  %221 = vmatprep.subr.mxu0 0.0
  %222 = vmatpush1.msra.mxu0 0.0
  %223 = vmatprep.subr.mxu0 0.0
  %224 = vmatpush1.msra.mxu0 0.0
  %225 = vmatprep.subr.mxu0 0.0
  %226 = vmatpush1.msra.mxu0 0.0
  %227 = vmatprep.subr.mxu0 0.0
  %228 = vmatpush1.msra.mxu0 0.0
  %229 = vmatprep.subr.mxu0 0.0
  %230 = vmatpush1.msra.mxu0 0.0
  %231 = vmatprep.subr.mxu0 0.0
  %232 = vmatpush1.msra.mxu0 0.0
  %233 = vmatprep.subr.mxu0 0.0
  %234 = vmatpush1.msra.mxu0 0.0
  %235 = vmatprep.subr.mxu0 0.0
  %236 = vmatpush1.msra.mxu0 0.0
  %237 = vmatprep.subr.mxu0 0.0
  %238 = vmatpush1.msra.mxu0 0.0
  %239 = vmatprep.subr.mxu0 0.0
  %240 = vmatpush1.msra.mxu0 0.0
  %241 = vmatprep.subr.mxu0 0.0
  %242 = vmatpush1.msra.mxu0 0.0
  %243 = vmatprep.subr.mxu0 0.0
  %244 = vmatpush1.msra.mxu0 0.0
  %245 = vmatprep.subr.mxu0 0.0
  %246 = vmatpush1.msra.mxu0 0.0
  %247 = vmatprep.subr.mxu0 0.0
  %248 = vmatpush1.msra.mxu0 0.0
  %249 = vmatprep.subr.mxu0 0.0
  %250 = vmatpush1.msra.mxu0 0.0
  %251 = vmatprep.subr.mxu0 0.0
  %252 = vmatpush1.msra.mxu0 0.0
  %253 = vmatprep.subr.mxu0 0.0
  %254 = vmatpush1.msra.mxu0 0.0
  %255 = vmatprep.subr.mxu0 0.0
  %256 = vmatpush1.msra.mxu0 0.0
  %257 = vmatprep.subr.mxu0 0.0
  %258 = vmatpush1.msra.mxu0 0.0
  %259 = vmatprep.subr.mxu0 0.0
  %260 = vmatpush1.msra.mxu0 0.0
  %261 = vmatprep.subr.mxu0 0.0
  %262 = vmatpush1.msra.mxu0 0.0
  %263 = vmatprep.subr.mxu0 0.0
  %264 = vmatpush1.msra.mxu0 0.0
  %265 = vmatprep.subr.mxu0 0.0
  %266 = vmatpush1.msra.mxu0 0.0
  %267 = vmatprep.subr.mxu0 0.0
  %268 = vmatpush1.msra.mxu0 0.0
  %269 = vmatprep.subr.mxu0 0.0
  %270 = vmatpush1.msra.mxu0 0.0
  %271 = vmatprep.subr.mxu0 0.0
  %272 = vmatpush1.msra.mxu0 0.0
  %273 = vmatprep.subr.mxu0 0.0
  %274 = vmatpush1.msra.mxu0 0.0
  %275 = vmatprep.mubr.f32.mxu0 0.0
  %276 = vmatmul.mubr.f32.gmra.mrb[0].mxu0 %v138
  %v277 = vpop.f32.mrb[0].mxu0
  %v278 = vadd.f32 %v132, %v277
  %v279 = vpop.f32.mrb[0].mxu0
  %280 = vdwg.mxu0
  %v281 = vld [vmem:[%s6] sm:$0x7]
  %v282 = vstv %s34
  %v283 = vmul.f32 %v282, %v207
  %v284 = vmul.f32 %v282, %v209
  %v285 = vmul.f32 %v282, %v278
  %v289 = vcombine.low %v283, %v284
  %v291 = vunpack.c.l.s4 1966171168
  %v292 = vunpack.c.0.s8 %v291
  %v293 = vlaneseq
  %v294 = vshrl.u32 %v293, 7
  %v295 = vsub.s32 %v292, %v294
  %v296 = vrot.slane %v289, %v295
  %v298 = vunpack.c.l.s4 1966171168
  %v299 = vunpack.c.0.s8 %v298
  %v300 = vlaneseq
  %v301 = vshrl.u32 %v300, 7
  %v302 = vsub.s32 %v299, %v301
  %v303 = vrot.slane %v285, %v302
  %v304 = vcombine.low %v296, %v303
  %v306 = vunpack.c.l.s4 1966171168
  %v307 = vunpack.c.0.s8 %v306
  %v308 = vlaneseq
  %v309 = vshrl.u32 %v308, 7
  %v310 = vsub.s32 %v307, %v309
  %v311 = vrot.slane %v304, %v310
  %v313 = vadd.f32 %v281, %v311
  %vm314 = vcmask 286720
  %315 = vst.msk [vmem:[#allocation2] sm:$0x1] %vm314, %v313
  %v317 = vlaneseq
  %v318 = vshrl.u32 %v317, 7
  %v319 = vsub.s32 0, %v318
  %v320 = vrot.slane %v313, %v319
  %321 = vrot.lane.b32.xlu0 %v320, 92
  %v322 = vpop.permute.xlu0 %321
  %324 = vst.msk [vmem:[#allocation2 + $0x1] sm:$0x1] %vm314, %v322
  %325 = vrot.lane.b32.xlu0 %v320, 56
  %v326 = vpop.permute.xlu0 %325
  %328 = vst.msk [vmem:[#allocation2 + $0x2] sm:$0x1] %vm314, %v326
  %v329 = vlaneseq
  %v330 = vshrl.u32 %v329, 7
  %v331 = vsub.s32 1, %v330
  %v332 = vrot.slane %v313, %v331
  %333 = vrot.lane.b32.xlu0 %v320, 20
  %v334 = vpop.permute.xlu0 %333
  %335 = vrot.lane.b32.xlu0 %v332, 20
  %v336 = vpop.permute.xlu0 %335
  %vm337 = vcmask 162816
  %v338 = vsel %vm337, %v334, %v336
  %340 = vst.msk [vmem:[#allocation2 + $0x3] sm:$0x1] %vm314, %v338
  %341 = vrot.lane.b32.xlu0 %v332, 112
  %v342 = vpop.permute.xlu0 %341
  %344 = vst.msk [vmem:[#allocation2 + $0x4] sm:$0x1] %vm314, %v342
  %345 = vrot.lane.b32.xlu0 %v332, 76
  %v346 = vpop.permute.xlu0 %345
  %348 = vst.msk [vmem:[#allocation2 + $0x5] sm:$0x1] %vm314, %v346
  %349 = vrot.lane.b32.xlu0 %v332, 40
  %v350 = vpop.permute.xlu0 %349
  %352 = vst.msk [vmem:[#allocation2 + $0x6] sm:$0x1] %vm314, %v350
  %v353 = vlaneseq
  %v354 = vshrl.u32 %v353, 7
  %v355 = vsub.s32 2, %v354
  %v356 = vrot.slane %v313, %v355
  %357 = vrot.lane.b32.xlu0 %v332, 4
  %v358 = vpop.permute.xlu0 %357
  %359 = vrot.lane.b32.xlu0 %v356, 4
  %v360 = vpop.permute.xlu0 %359
  %vm361 = vcmask 31744
  %v362 = vsel %vm361, %v358, %v360
  %364 = vst.msk [vmem:[#allocation2 + $0x7] sm:$0x1] %vm314, %v362
  %v365 = vld [vmem:[#allocation2] sm:$0xff]
  %v366 = vpack.c.bf16 %v365, %v365
  %v367 = vld [vmem:[%s8] sm:$0xff]
  %v368 = vld [vmem:[%s8 + $0x8] sm:$0xff]
  %v369 = vld [vmem:[%s8 + $0x10] sm:$0xff]
  %v370 = vld [vmem:[%s8 + $0x18] sm:$0xff]
  %v371 = vld [vmem:[%s8 + $0x20] sm:$0x33]
  %v372 = vld [vmem:[%s7] sm:$0xff]
  %374 = vset.pattern.permute.xlu0 0
  %375 = vperm.xlu0 %374, %v372
  %v376 = vpop.permute.xlu0 %375
  %v383 = vunpack.c.l.b16 %v367
  %v384 = vunpack.c.h.b16 %v367
  %v385 = vunpack.c.l.b16 %v368
  %v386 = vunpack.c.h.b16 %v368
  %v387 = vunpack.c.l.b16 %v369
  %v388 = vunpack.c.h.b16 %v369
  %v389 = vunpack.c.l.b16 %v370
  %v390 = vunpack.c.h.b16 %v370
  %v391 = vunpack.c.l.b16 %v371
  %v392 = vunpack.c.h.b16 %v371
  %v393 = vpack.c.b16 %v385, %v383
  %v394 = vpack.c.b16 %v386, %v384
  %v395 = vpack.c.b16 %v389, %v387
  %v396 = vpack.c.b16 %v390, %v388
  %v397 = vpack.c.b16 %v391, %v391
  %v398 = vpack.c.b16 %v392, %v392
  %vm403 = vcmask 293888
  %v405 = vsel %vm403, %v366, 0
  %vm407 = vcmask 1041408
  %v409 = vsel %vm407, %v397, 0
  %v412 = vsel %vm407, %v398, 0
  %414 = vmatprep.subr.bf16.mxu0 %v394
  %415 = vmatpush1.bf16.msra.mxu0 %v393
  %416 = vmatprep.subr.bf16.mxu0 %v396
  %417 = vmatpush1.bf16.msra.mxu0 %v395
  %418 = vmatprep.subr.bf16.mxu0 %v412
  %419 = vmatpush1.bf16.msra.mxu0 %v409
  %420 = vmatprep.subr.bf16.mxu0 0
  %421 = vmatpush1.bf16.msra.mxu0 0
  %422 = vmatprep.subr.bf16.mxu0 0
  %423 = vmatpush1.bf16.msra.mxu0 0
  %424 = vmatprep.subr.bf16.mxu0 0
  %425 = vmatpush1.bf16.msra.mxu0 0
  %426 = vmatprep.subr.bf16.mxu0 0
  %427 = vmatpush1.bf16.msra.mxu0 0
  %428 = vmatprep.subr.bf16.mxu0 0
  %429 = vmatpush1.bf16.msra.mxu0 0
  %430 = vmatprep.subr.bf16.mxu0 0
  %431 = vmatpush1.bf16.msra.mxu0 0
  %432 = vmatprep.subr.bf16.mxu0 0
  %433 = vmatpush1.bf16.msra.mxu0 0
  %434 = vmatprep.subr.bf16.mxu0 0
  %435 = vmatpush1.bf16.msra.mxu0 0
  %436 = vmatprep.subr.bf16.mxu0 0
  %437 = vmatpush1.bf16.msra.mxu0 0
  %438 = vmatprep.subr.bf16.mxu0 0
  %439 = vmatpush1.bf16.msra.mxu0 0
  %440 = vmatprep.subr.bf16.mxu0 0
  %441 = vmatpush1.bf16.msra.mxu0 0
  %442 = vmatprep.subr.bf16.mxu0 0
  %443 = vmatpush1.bf16.msra.mxu0 0
  %444 = vmatprep.subr.bf16.mxu0 0
  %445 = vmatpush1.bf16.msra.mxu0 0
  %446 = vmatprep.mubr.bf16.mxu0 0
  %447 = vmatmul.mubr.bf16.gmra.mrb[0].mxu0 %v405
  %v448 = vpop.f32.mrb[0].mxu0
  %v449 = vadd.f32 %v376, %v448
  %v450 = vpop.f32.mrb[0].mxu0
  %v451 = vadd.f32 %v376, %v450
  %v452 = vpop.f32.mrb[0].mxu0
  %v453 = vpop.f32.mrb[0].mxu0
  %454 = vdwg.mxu0
  %455 = vst [vmem:[%s9] sm:$0xff] %v449
  %456 = vst [vmem:[%s9 + $0x8] sm:$0xff] %v451
  // Predicated region
  $region38: #{caconv_forward.1} parent=0 // pred_check
    _
  $region39: #{caconv_forward.1} parent=0 // pred_check_branch
    %458 = sbr.rel (0) target = $region41
  $region40: #{caconv_forward.1} parent=0 // pred_region
    _
  $region41: #{caconv_forward.1} parent=0 // pred_fallthru
    _
  // Predicated region
  $region42: #{caconv_forward.1} parent=0 // pred_check
    _
  $region43: #{caconv_forward.1} parent=0 // pred_check_branch
    %460 = sbr.rel (0) target = $region45
  $region44: #{caconv_forward.1} parent=0 // pred_region
    _
  $region45: #{caconv_forward.1} parent=0 // pred_fallthru
    _

</llo_original>
